<compile_context>
chip_gen: v7x
topology: tpu7x:2x2x1
jax: 0.10.0
libtpu: 0.0.40
codegen_flags: <defaults>
</compile_context>

<pallas_src>
import jax
import jax.numpy as jnp
from jax import lax
from jax.experimental import pallas as pl
from jax.experimental.pallas import tpu as pltpu

SQRT_HALF = 0.7071067811865476
BN_EPS = 1e-5
RESIDENT_W_BYTES_MAX = 8 * 1024 * 1024   # keep 1x1 weight VMEM-resident below this


def _vmem_limit_bytes():
    """Generation-aware scoped-VMEM limit."""
    try:
        kind = jax.devices()[0].device_kind.lower()
    except Exception:
        return 32 * 1024 * 1024
    if "7" in kind:
        return 48 * 1024 * 1024          # v7x: 64 MiB physical VMEM
    if "5" in kind or "6" in kind:
        return 64 * 1024 * 1024          # v5e/v6e: 128 MiB physical VMEM
    return 32 * 1024 * 1024


VMEM_LIMIT_BYTES = _vmem_limit_bytes()


def _gelu(x):
    # exact (erf-based) GELU, matching torch.nn.GELU() default
    return 0.5 * x * (1.0 + lax.erf(x * SQRT_HALF))


def _round_up(x, m):
    return (x + m - 1) // m * m


def _pick_tile(dim, target, align):
    """Largest tile <= target (multiple of `align`) that evenly divides the
    align-rounded dim; falls back to `target` (pad) rather than shrinking the
    tile below target/2."""
    dim_a = _round_up(dim, align)
    best = min(target, dim_a)
    cand = best
    while cand >= align and cand * 2 >= best:
        if dim_a % cand == 0:
            return cand
        cand -= align
    return best


# ---------------------------------------------------------------------------
# Kernel 1a: resident-weight GEMM  (M,K)@(K,N) + bias -> GELU -> folded BN.
# Whole weight sits in VMEM (constant index_map -> DMA'd once per call).
# aff = (3, N): rows are bias / BN-scale / BN-shift.
# ---------------------------------------------------------------------------
def _matmul_gelu_bn_resident_kernel(x_ref, w_ref, aff_ref, o_ref):
    acc = jnp.dot(x_ref[...], w_ref[...], preferred_element_type=jnp.float32)
    acc = acc + aff_ref[0:1, :]
    h = _gelu(acc)
    o_ref[...] = (h * aff_ref[1:2, :] + aff_ref[2:3, :]).astype(o_ref.dtype)


# ---------------------------------------------------------------------------
# Kernel 1b: tiled GEMM fallback (3-D grid, f32 accumulator over the K axis)
# for weights too large to keep resident.
# ---------------------------------------------------------------------------
def _matmul_gelu_bn_tiled_kernel(x_ref, w_ref, aff_ref, o_ref, acc_ref):
    @pl.when(pl.program_id(2) == 0)
    def _():
        acc_ref[...] = jnp.zeros_like(acc_ref)

    acc_ref[...] += jnp.dot(x_ref[...], w_ref[...],
                            preferred_element_type=jnp.float32)

    @pl.when(pl.program_id(2) == pl.num_programs(2) - 1)
    def _():
        acc = acc_ref[...] + aff_ref[0:1, :]
        h = _gelu(acc)
        o_ref[...] = (h * aff_ref[1:2, :] + aff_ref[2:3, :]).astype(o_ref.dtype)


def matmul_gelu_bn(x, w, aff, out_dtype=jnp.float32,
                   tm_target=512, tn_target=256, tk_target=1024):
    """x:(M,K) @ w:(K,N) + bias -> GELU -> scale*h + shift ; aff:(3,N)."""
    M, K = x.shape
    Kw, N = w.shape
    assert K == Kw, (K, Kw)
    assert aff.shape == (3, N), aff.shape

    x_bytes = jnp.dtype(x.dtype).itemsize
    w_elt_bytes = jnp.dtype(w.dtype).itemsize
    o_bytes = jnp.dtype(out_dtype).itemsize

    Kp = _round_up(K, 128)
    Np = _round_up(N, 128)
    w_total_bytes = Kp * Np * w_elt_bytes

    if w_total_bytes <= RESIDENT_W_BYTES_MAX:
        # ---- resident-weight path: 1-D grid over M tiles -------------------
        budget = int(0.75 * VMEM_LIMIT_BYTES) - 2 * w_total_bytes - 2 * 3 * Np * 4
        tm = tm_target
        while tm > 16 and 2 * tm * (Kp * x_bytes + Np * o_bytes) > budget:
            tm //= 2
        tm = _pick_tile(M, max(tm, 16), 16)
        Mp = _round_up(M, tm)

        if (Mp, Kp) != (M, K):
            x = jnp.pad(x, ((0, Mp - M), (0, Kp - K)))
        if (Kp, Np) != (K, N):
            w = jnp.pad(w, ((0, Kp - K), (0, Np - N)))
        if Np != N:
            aff = jnp.pad(aff, ((0, 0), (0, Np - N)))

        out = pl.pallas_call(
            _matmul_gelu_bn_resident_kernel,
            out_shape=jax.ShapeDtypeStruct((Mp, Np), out_dtype),
            grid_spec=pltpu.PrefetchScalarGridSpec(
                num_scalar_prefetch=0,
                grid=(Mp // tm,),
                in_specs=[
                    pl.BlockSpec((tm, Kp), lambda i: (i, 0)),
                    pl.BlockSpec((Kp, Np), lambda i: (0, 0)),   # constant -> 1 DMA
                    pl.BlockSpec((3, Np), lambda i: (0, 0)),
                ],
                out_specs=pl.BlockSpec((tm, Np), lambda i: (i, 0))),
            compiler_params=pltpu.CompilerParams(
                dimension_semantics=("parallel",),
                vmem_limit_bytes=VMEM_LIMIT_BYTES),
        )(x, w, aff)
    else:
        # ---- tiled fallback for large weights -------------------------------
        tm = _pick_tile(M, tm_target, 16)
        tn = _pick_tile(N, tn_target, 128)
        tk = _pick_tile(K, tk_target, 128)
        Mp, Np, Kp = _round_up(M, tm), _round_up(N, tn), _round_up(K, tk)
        if (Mp, Kp) != (M, K):
            x = jnp.pad(x, ((0, Mp - M), (0, Kp - K)))
        if (Kp, Np) != (K, N):
            w = jnp.pad(w, ((0, Kp - K), (0, Np - N)))
        if Np != N:
            aff = jnp.pad(aff, ((0, 0), (0, Np - N)))

        out = pl.pallas_call(
            _matmul_gelu_bn_tiled_kernel,
            out_shape=jax.ShapeDtypeStruct((Mp, Np), out_dtype),
            grid_spec=pltpu.PrefetchScalarGridSpec(
                num_scalar_prefetch=0,
                grid=(Mp // tm, Np // tn, Kp // tk),
                in_specs=[
                    pl.BlockSpec((tm, tk), lambda i, j, k: (i, k)),
                    pl.BlockSpec((tk, tn), lambda i, j, k: (k, j)),
                    pl.BlockSpec((3, tn), lambda i, j, k: (0, j)),
                ],
                out_specs=pl.BlockSpec((tm, tn), lambda i, j, k: (i, j)),
                scratch_shapes=[pltpu.VMEM((tm, tn), jnp.float32)]),
            compiler_params=pltpu.CompilerParams(
                dimension_semantics=("parallel", "parallel", "arbitrary"),
                vmem_limit_bytes=VMEM_LIMIT_BYTES),
        )(x, w, aff)

    if out.shape != (M, N):
        out = out[:M, :N]
    return out


# ---------------------------------------------------------------------------
# Kernel 2: depthwise ks x ks conv ('same' zero padding) + bias -> GELU ->
#           folded-BN affine -> residual add.  Grid over (batch, channel tile).
# ---------------------------------------------------------------------------
def _dwconv_gelu_bn_res_kernel(x_ref, w_ref, aff_ref, o_ref, xpad_ref):
    _, H, W, C = x_ref.shape
    ks = w_ref.shape[0]
    pad = ks // 2
    Wp = W + 2 * pad
    dt = xpad_ref.dtype

    # 'same' zero halo in a persistent VMEM scratch.  Only the thin border
    # strips are zeroed per step (the interior is fully overwritten below);
    # zeroing the border every step (not just on grid step 0) stays correct
    # even if the parallel grid is sharded across TensorCores (v7x).
    if pad > 0:
        xpad_ref[:, :pad, :, :] = jnp.zeros((1, pad, Wp, C), dt)
        xpad_ref[:, pad + H:, :, :] = jnp.zeros((1, pad, Wp, C), dt)
        xpad_ref[:, pad:pad + H, :pad, :] = jnp.zeros((1, H, pad, C), dt)
        xpad_ref[:, pad:pad + H, pad + W:, :] = jnp.zeros((1, H, pad, C), dt)
    xpad_ref[:, pad:pad + H, pad:pad + W, :] = x_ref[...]

    xpad = xpad_ref[...].astype(jnp.float32)            # (1, H+2p, W+2p, C)
    w = w_ref[...].astype(jnp.float32)                  # (ks, ks, C)

    acc = jnp.zeros((1, H, W, C), jnp.float32)
    # W is the sublane dim (channels are lanes): hoist the unaligned W shift
    # out of the kh loop -> 3 sublane shifts instead of 9; kh slices are cheap.
    for kw in range(ks):
        plane = xpad[:, :, kw:kw + W, :]                # (1, H+2p, W, C)
        for kh in range(ks):
            acc = acc + plane[:, kh:kh + H, :, :] * w[kh, kw, :]

    acc = acc + aff_ref[0:1, :]
    h = _gelu(acc)
    h = h * aff_ref[1:2, :] + aff_ref[2:3, :]
    o_ref[...] = (h + x_ref[...].astype(jnp.float32)).astype(o_ref.dtype)


def dwconv_gelu_bn_res(x_nhwc, w_kkc, aff, tc_target=256):
    B, H, W, C = x_nhwc.shape
    ks = w_kkc.shape[0]
    pad = ks // 2
    tc = _pick_tile(C, tc_target, 128) if C % 128 == 0 else C
    # Give multi-TensorCore chips (v7x) enough parallel grid extent.
    if C % 128 == 0 and tc > 128 and B * (C // tc) < 8:
        tc = 128
    grid = (B, C // tc)
    # TODO(synk): for very large H,W on v7x (64 MiB VMEM) add spatial H-tiling
    # with a `pad`-row halo instead of whole-image blocks.

    return pl.pallas_call(
        _dwconv_gelu_bn_res_kernel,
        out_shape=jax.ShapeDtypeStruct((B, H, W, C), x_nhwc.dtype),
        grid_spec=pltpu.PrefetchScalarGridSpec(
            num_scalar_prefetch=0,
            grid=grid,
            in_specs=[
                pl.BlockSpec((1, H, W, tc), lambda bi, ci: (bi, 0, 0, ci)),
                pl.BlockSpec((ks, ks, tc), lambda bi, ci: (0, 0, ci)),
                pl.BlockSpec((3, tc), lambda bi, ci: (0, ci)),
            ],
            out_specs=pl.BlockSpec((1, H, W, tc), lambda bi, ci: (bi, 0, 0, ci)),
            scratch_shapes=[
                # halo scratch kept in the activation dtype (bf16 on fast path)
                pltpu.VMEM((1, H + 2 * pad, W + 2 * pad, tc), x_nhwc.dtype)]),
        compiler_params=pltpu.CompilerParams(
            dimension_semantics=("parallel", "parallel"),
            vmem_limit_bytes=VMEM_LIMIT_BYTES),
    )(x_nhwc, w_kkc, aff)


# ---------------------------------------------------------------------------
# Parameters: PyTorch-layout init, one-time preprocessing, forward glue
# ---------------------------------------------------------------------------
def _fold_bn(gamma, beta, mean, var):
    scale = gamma / jnp.sqrt(var + BN_EPS)
    shift = beta - mean * scale
    return scale, shift


def init_params(key, channels, dim, depth, sfa_width, kernel_size):
    def bn_params(k):
        k1, k2, k3, k4 = jax.random.split(k, 4)
        gamma = 1.0 + 0.1 * jax.random.normal(k1, (dim,), jnp.float32)
        beta = 0.1 * jax.random.normal(k2, (dim,), jnp.float32)
        mean = 0.1 * jax.random.normal(k3, (dim,), jnp.float32)
        var = 0.5 + jax.random.uniform(k4, (dim,), jnp.float32)
        return (gamma, beta, mean, var)

    keys = jax.random.split(key, 3 + 6 * depth)
    ki = iter(keys)
    params = {
        "channels": channels, "dim": dim, "depth": depth,
        "patch": sfa_width, "ks": kernel_size,
        "w1": 0.1 * jax.random.normal(next(ki), (dim, channels, sfa_width, sfa_width), jnp.float32),
        "b1": 0.1 * jax.random.normal(next(ki), (dim,), jnp.float32),
        "bn1": bn_params(next(ki)),
        "layers": [],
    }
    for _ in range(depth):
        layer = {
            "wd": 0.2 * jax.random.normal(next(ki), (dim, 1, kernel_size, kernel_size), jnp.float32),
            "bd": 0.1 * jax.random.normal(next(ki), (dim,), jnp.float32),
            "bnd": bn_params(next(ki)),
            "wp": 0.1 * jax.random.normal(next(ki), (dim, dim, 1, 1), jnp.float32),
            "bp": 0.1 * jax.random.normal(next(ki), (dim,), jnp.float32),
            "bnp": bn_params(next(ki)),
        }
        params["layers"].append(layer)
    return params


def prepare_params(params, act_dtype=jnp.float32):
    """One-time prep hoisted out of the forward loop: weight transposes,
    BN folding, bias/scale/shift packing into one (3, DIMp) array, lane
    alignment padding, MXU dtype casts."""
    C = params["channels"]
    DIM = params["dim"]
    P = params["patch"]
    KS = params["ks"]
    assert KS % 2 == 1, "depthwise kernel assumes odd kernel_size ('same' pad)"

    DIMp = _round_up(DIM, 128)
    K1 = P * P * C
    K1p = _round_up(K1, 128)

    def pad_vec(v):                                   # (DIM,) -> (1, DIMp) f32
        return jnp.pad(v.astype(jnp.float32), (0, DIMp - DIM)).reshape(1, DIMp)

    def pack_aff(bias, bn):                           # -> (3, DIMp) f32
        scale, shift = _fold_bn(*bn)
        return jnp.concatenate([pad_vec(bias), pad_vec(scale), pad_vec(shift)], 0)

    w1 = params["w1"].transpose(2, 3, 1, 0).reshape(K1, DIM)          # (K1, DIM)
    w1 = jnp.pad(w1, ((0, K1p - K1), (0, DIMp - DIM))).astype(act_dtype)

    prep = {
        "dim": DIM, "dim_p": DIMp, "patch": P, "ks": KS,
        "channels": C, "k1": K1, "k1_p": K1p,
        "w1": w1, "aff1": pack_aff(params["b1"], params["bn1"]),
        "layers": [],
    }
    for layer in params["layers"]:
        wd = layer["wd"][:, 0].transpose(1, 2, 0)                     # (ks, ks, DIM)
        wd = jnp.pad(wd, ((0, 0), (0, 0), (0, DIMp - DIM))).astype(jnp.float32)
        wp = layer["wp"][:, :, 0, 0].T                                # (DIM, DIM)
        wp = jnp.pad(wp, ((0, DIMp - DIM), (0, DIMp - DIM))).astype(act_dtype)
        prep["layers"].append({
            "wd": wd, "affd": pack_aff(layer["bd"], layer["bnd"]),
            "wp": wp, "affp": pack_aff(layer["bp"], layer["bnp"]),
        })
    return prep


def convmixer_forward(x_nchw, prep):
    B, C, H, W = x_nchw.shape
    P, DIM, DIMp = prep["patch"], prep["dim"], prep["dim_p"]
    K1, K1p = prep["k1"], prep["k1_p"]
    act_dtype = prep["w1"].dtype
    Ho, Wo = H // P, W // P
    M = B * Ho * Wo

    # Patch extraction (stride == kernel conv -> GEMM); cast before the 6-D
    # transpose so its HBM round trip happens at act_dtype width.
    # TODO(synk): fold this transpose into the stem GEMM's index_map to remove
    # the extra HBM round trip entirely.
    x_src = x_nchw
    if jnp.dtype(act_dtype).itemsize < jnp.dtype(x_nchw.dtype).itemsize:
        x_src = x_nchw.astype(act_dtype)
    patches = x_src.reshape(B, C, Ho, P, Wo, P)
    patches = patches.transpose(0, 2, 4, 3, 5, 1).reshape(M, K1).astype(act_dtype)
    if K1p != K1:
        patches = jnp.pad(patches, ((0, 0), (0, K1p - K1)))

    h = matmul_gelu_bn(patches, prep["w1"], prep["aff1"], out_dtype=act_dtype)
    h = h.reshape(B, Ho, Wo, DIMp)

    for layer in prep["layers"]:
        h = dwconv_gelu_bn_res(h, layer["wd"], layer["affd"])
        h = matmul_gelu_bn(h.reshape(M, DIMp), layer["wp"], layer["affp"],
                           out_dtype=act_dtype)
        h = h.reshape(B, Ho, Wo, DIMp)

    # flatten(2,3).permute(0,2,1) in NCHW == reshape in NHWC; drop channel pad.
    return h.reshape(B, Ho * Wo, DIMp)[:, :, :DIM]


# ---------------------------------------------------------------------------
# Pure-JAX reference (mirrors the PyTorch module, NCHW) for self-check
# ---------------------------------------------------------------------------
def reference_forward(x_nchw, params):
    DIM, P = params["dim"], params["patch"]

    def bn(x, p):
        g, b, m, v = p
        return ((x - m[None, :, None, None]) / jnp.sqrt(v[None, :, None, None] + BN_EPS)
                * g[None, :, None, None] + b[None, :, None, None])

    h = lax.conv_general_dilated(x_nchw, params["w1"], (P, P), "VALID",
                                 dimension_numbers=("NCHW", "OIHW", "NCHW"))
    h = h + params["b1"][None, :, None, None]
    h = bn(_gelu(h), params["bn1"])
    for layer in params["layers"]:
        r = lax.conv_general_dilated(h, layer["wd"], (1, 1), "SAME",
                                     dimension_numbers=("NCHW", "OIHW", "NCHW"),
                                     feature_group_count=DIM)
        r = r + layer["bd"][None, :, None, None]
        h = h + bn(_gelu(r), layer["bnd"])
        h = lax.conv_general_dilated(h, layer["wp"], (1, 1), "VALID",
                                     dimension_numbers=("NCHW", "OIHW", "NCHW"))
        h = h + layer["bp"][None, :, None, None]
        h = bn(_gelu(h), layer["bnp"])
    B, D, Ho, Wo = h.shape
    return h.reshape(B, D, Ho * Wo).transpose(0, 2, 1)


if __name__ == "__main__":
    B, C, H, W = 2, 1, 20, 20          # small spatial; 20/5 -> 4x4 patch grid
    DIM, DEPTH, SFA, KS = 32, 2, 5, 3

    key = jax.random.PRNGKey(0)
    kx, kp = jax.random.split(key)
    x = jax.random.normal(kx, (B, C, H, W), jnp.float32)
    params = init_params(kp, C, DIM, DEPTH, SFA, KS)

    ref = reference_forward(x, params)

    # f32 activation path: tight numerical check against the pure-JAX reference.
    prep_f32 = prepare_params(params, act_dtype=jnp.float32)
    out_f32 = jax.block_until_ready(convmixer_forward(x, prep_f32))
    assert out_f32.shape == (B, (H // SFA) * (W // SFA), DIM), out_f32.shape
    assert jnp.allclose(out_f32.astype(jnp.float32), ref, atol=1e-3, rtol=1e-3), \
        float(jnp.max(jnp.abs(out_f32.astype(jnp.float32) - ref)))

    # bf16 activation / matmul-input path (fast MXU + half HBM traffic on
    # v6e/v7x; accumulation and elementwise math stay f32) -> looser tolerance.
    prep_bf16 = prepare_params(params, act_dtype=jnp.bfloat16)
    out_bf16 = jax.block_until_ready(convmixer_forward(x, prep_bf16))
    assert out_bf16.shape == (B, (H // SFA) * (W // SFA), DIM), out_bf16.shape
    assert jnp.allclose(out_bf16.astype(jnp.float32), ref, atol=3e-1, rtol=3e-1), \
        float(jnp.max(jnp.abs(out_bf16.astype(jnp.float32) - ref)))

    print("KERNEL_OK")
</pallas_src>

<mosaic_0001>
module attributes {stable_mosaic.version = 11 : i64} {
  func.func @_matmul_gelu_bn_resident_kernel(%arg0: i32, %arg1: memref<32x128xf32, #tpu.memory_space<vmem>>, %arg2: memref<128x128xf32, #tpu.memory_space<vmem>>, %arg3: memref<3x128xf32, #tpu.memory_space<vmem>>, %arg4: memref<32x128xf32, #tpu.memory_space<vmem>>) attributes {dimension_semantics = [#tpu.dimension_semantics<parallel>], iteration_bounds = array<i64: 1>, scalar_prefetch = 0 : i64, scratch_operands = 0 : i64, tpu.core_type = #tpu.core_type<tc>, window_params = [{transform_indices = @transform_0, window_bounds = array<i64: 32, 128>}, {pipeline_mode = #tpu.pipeline_mode<synchronous>, transform_indices = @transform_1, window_bounds = array<i64: 128, 128>}, {pipeline_mode = #tpu.pipeline_mode<synchronous>, transform_indices = @transform_2, window_bounds = array<i64: 3, 128>}, {transform_indices = @transform_3, window_bounds = array<i64: 32, 128>}]} {
    %c0 = arith.constant 0 : index
    %c0_0 = arith.constant 0 : index
    %0 = vector.load %arg1[%c0, %c0_0] : memref<32x128xf32, #tpu.memory_space<vmem>>, vector<32x128xf32>
    %c0_1 = arith.constant 0 : index
    %c0_2 = arith.constant 0 : index
    %1 = vector.load %arg2[%c0_1, %c0_2] : memref<128x128xf32, #tpu.memory_space<vmem>>, vector<128x128xf32>
    %cst = arith.constant dense<0.000000e+00> : vector<32x128xf32>
    %2 = tpu.matmul %0, %1, %cst {dimension_numbers = #tpu.dot_dimension_numbers<[1], [0], [0], [1], [0, 0, 1, 1], [], []>} : vector<32x128xf32>, vector<128x128xf32>, vector<32x128xf32> -> vector<32x128xf32>
    %c0_3 = arith.constant 0 : index
    %c0_4 = arith.constant 0 : index
    %3 = vector.load %arg3[%c0_3, %c0_4] : memref<3x128xf32, #tpu.memory_space<vmem>>, vector<1x128xf32>
    %4 = vector.broadcast %3 : vector<1x128xf32> to vector<32x128xf32>
    %5 = arith.addf %2, %4 : vector<32x128xf32>
    %cst_5 = arith.constant 5.000000e-01 : f32
    %6 = vector.broadcast %cst_5 : f32 to vector<32x128xf32>
    %7 = arith.mulf %6, %5 : vector<32x128xf32>
    %cst_6 = arith.constant 0.707106769 : f32
    %8 = vector.broadcast %cst_6 : f32 to vector<32x128xf32>
    %9 = arith.mulf %5, %8 : vector<32x128xf32>
    %10 = math.erf %9 : vector<32x128xf32>
    %cst_7 = arith.constant 1.000000e+00 : f32
    %11 = vector.broadcast %cst_7 : f32 to vector<32x128xf32>
    %12 = arith.addf %11, %10 : vector<32x128xf32>
    %13 = arith.mulf %7, %12 : vector<32x128xf32>
    %c1 = arith.constant 1 : index
    %c0_8 = arith.constant 0 : index
    %14 = vector.load %arg3[%c1, %c0_8] : memref<3x128xf32, #tpu.memory_space<vmem>>, vector<1x128xf32>
    %15 = vector.broadcast %14 : vector<1x128xf32> to vector<32x128xf32>
    %16 = arith.mulf %13, %15 : vector<32x128xf32>
    %c2 = arith.constant 2 : index
    %c0_9 = arith.constant 0 : index
    %17 = vector.load %arg3[%c2, %c0_9] : memref<3x128xf32, #tpu.memory_space<vmem>>, vector<1x128xf32>
    %18 = vector.broadcast %17 : vector<1x128xf32> to vector<32x128xf32>
    %19 = arith.addf %16, %18 : vector<32x128xf32>
    %c0_10 = arith.constant 0 : index
    %c0_11 = arith.constant 0 : index
    %20 = vector.load %arg4[%c0_10, %c0_11] : memref<32x128xf32, #tpu.memory_space<vmem>>, vector<32x128xf32>
    tpu.vector_store %arg4[%c0_10, %c0_11], %19 {strides = array<i32>} : memref<32x128xf32, #tpu.memory_space<vmem>>, vector<32x128xf32>,
    return
  }
  func.func @transform_0(%arg0: i32) -> (i32, i32) {
    %c0_i32 = arith.constant 0 : i32
    %c0_i32_0 = arith.constant 0 : i32
    return %arg0, %c0_i32 : i32, i32
  }
  func.func @transform_1(%arg0: i32) -> (i32, i32) {
    %c0_i32 = arith.constant 0 : i32
    %c0_i32_0 = arith.constant 0 : i32
    %c0_i32_1 = arith.constant 0 : i32
    return %c0_i32, %c0_i32_0 : i32, i32
  }
  func.func @transform_2(%arg0: i32) -> (i32, i32) {
    %c0_i32 = arith.constant 0 : i32
    %c0_i32_0 = arith.constant 0 : i32
    %c0_i32_1 = arith.constant 0 : i32
    return %c0_i32, %c0_i32_0 : i32, i32
  }
  func.func @transform_3(%arg0: i32) -> (i32, i32) {
    %c0_i32 = arith.constant 0 : i32
    %c0_i32_0 = arith.constant 0 : i32
    return %arg0, %c0_i32 : i32, i32
  }
}

</mosaic_0001>

<llo_original>
// kernel: tpu_custom_call.1
$region0: #{tpu_custom_call.1}
  #allocation0 [shape = 'u32[]', space=smem, size = 0x4, offset = 0x4, fixed_abs, tag = 'smem constant byte address 0x4 - core index']
  #allocation1 [shape = 'u32[144,128]{1,0:T(1,128)}', space=vmem, size = 0x12000, scoped, tag = 'internal scratch']
  %s0 = inlined_call_operand.hbm [shape: f32[32,128], index: 0, kind: input, shape index: {}]
  %s1 = inlined_call_operand.hbm [shape: f32[128,128], index: 1, kind: input, shape index: {}]
  %s2 = inlined_call_operand.vmem [shape: f32[3,128], index: 2, kind: input, shape index: {}]
  %s3 = inlined_call_operand.hbm [shape: f32[32,128], index: 3, kind: output, shape index: {}]
  %s4 = sld [smem:[#allocation0]]
  $region30: #{tpu_custom_call.1} parent=0
    _
  %s6 = ssub.s32 1, %s4
  %s7 = scalar_select 0, %s6, %s4
  $region1: #{tpu_custom_call.1} parent=0
    #allocation2 [shape = 'u8[16384]{0}', space=vmem, size = 0x4000, scoped, tag = 'input window, operand 0, single buffered']
    #allocation3 [shape = 's32[1]{0}', space=sflag, size = 0x4, scoped, tag = 'scoped memory for tpu_custom_call.1']
    #allocation4 [shape = 's32[1]{0}', space=sflag, size = 0x4, scoped, tag = 'scoped memory for tpu_custom_call.1']
    #allocation5 [shape = 'u8[65536]{0}', space=vmem, size = 0x10000, scoped, tag = 'input window, operand 1, single buffered']
    #allocation6 [shape = 's32[1]{0}', space=sflag, size = 0x4, scoped, tag = 'scoped memory for tpu_custom_call.1']
    #allocation7 [shape = 'u8[16384]{0}', space=vmem, size = 0x4000, scoped, tag = 'output window, operand 0, single buffered']
    %8 = vsyncpa [#allocation3], 0
    %9 = vsyncpa [#allocation6], 0
    %10 = vsyncpa [#allocation4], 0
    // Predicated region
    $region2: #{tpu_custom_call.1} parent=1 // pred_check
      _
    $region3: #{tpu_custom_call.1} parent=1 // pred_check_branch
      %12 = sbr.rel (0) target = $region5
    $region4: #{tpu_custom_call.1} parent=1 // pred_region
      %s14 = ssub.s32 512, 512
      %15 = vsyncadd [#allocation3], %s14
      %s16 = sshll.u32 [#allocation2], 4
      %s17 = int_to_ptr.vmem [resolvable:$true] %s16
      %22 = dma.hbm_to_vmem [thread:$0]  %s0, 512, %s17, [#allocation3], 128, 128, 8
    $region5: #{tpu_custom_call.1} parent=1 // pred_fallthru
      _
    // Predicated region
    $region6: #{tpu_custom_call.1} parent=1 // pred_check
      _
    $region7: #{tpu_custom_call.1} parent=1 // pred_check_branch
      %24 = sbr.rel (0) target = $region9
    $region8: #{tpu_custom_call.1} parent=1 // pred_region
      %s26 = ssub.s32 2048, 2048
      %27 = vsyncadd [#allocation6], %s26
      %s28 = sshll.u32 [#allocation5], 4
      %s29 = int_to_ptr.vmem [resolvable:$true] %s28
      %34 = dma.hbm_to_vmem [thread:$0]  %s1, 2048, %s29, [#allocation6], 128, 128, 8
    $region9: #{tpu_custom_call.1} parent=1 // pred_fallthru
      _
    // Predicated region
    $region10: #{tpu_custom_call.1} parent=1 // pred_check
      _
    $region11: #{tpu_custom_call.1} parent=1 // pred_check_branch
      %36 = sbr.rel (0) target = $region13
    $region12: #{tpu_custom_call.1} parent=1 // pred_region
      _
    $region13: #{tpu_custom_call.1} parent=1 // pred_fallthru
      _
    // Predicated region
    $region14: #{tpu_custom_call.1} parent=1 // pred_check
      _
    $region15: #{tpu_custom_call.1} parent=1 // pred_check_branch
      %38 = sbr.rel (0) target = $region17
    $region16: #{tpu_custom_call.1} parent=1 // pred_region
      %39 = dma.done [#allocation3], 512
    $region17: #{tpu_custom_call.1} parent=1 // pred_fallthru
      _
    // Predicated region
    $region18: #{tpu_custom_call.1} parent=1 // pred_check
      _
    $region19: #{tpu_custom_call.1} parent=1 // pred_check_branch
      %41 = sbr.rel (0) target = $region21
    $region20: #{tpu_custom_call.1} parent=1 // pred_region
      %42 = dma.done [#allocation6], 2048
    $region21: #{tpu_custom_call.1} parent=1 // pred_fallthru
      _
    %v43 = vld [vmem:[#allocation2] sm:$0xff]
    %v44 = vld [vmem:[#allocation2 + $0x8] sm:$0xff]
    %v45 = vld [vmem:[#allocation2 + $0x10] sm:$0xff]
    %v46 = vld [vmem:[#allocation2 + $0x18] sm:$0xff]
    %v47 = vld [vmem:[#allocation5] sm:$0xff]
    %v48 = vld [vmem:[#allocation5 + $0x8] sm:$0xff]
    %v49 = vld [vmem:[#allocation5 + $0x10] sm:$0xff]
    %v50 = vld [vmem:[#allocation5 + $0x18] sm:$0xff]
    %v51 = vld [vmem:[#allocation5 + $0x20] sm:$0xff]
    %v52 = vld [vmem:[#allocation5 + $0x28] sm:$0xff]
    %v53 = vld [vmem:[#allocation5 + $0x30] sm:$0xff]
    %v54 = vld [vmem:[#allocation5 + $0x38] sm:$0xff]
    %v55 = vld [vmem:[#allocation5 + $0x40] sm:$0xff]
    %v56 = vld [vmem:[#allocation5 + $0x48] sm:$0xff]
    %v57 = vld [vmem:[#allocation5 + $0x50] sm:$0xff]
    %v58 = vld [vmem:[#allocation5 + $0x58] sm:$0xff]
    %v59 = vld [vmem:[#allocation5 + $0x60] sm:$0xff]
    %v60 = vld [vmem:[#allocation5 + $0x68] sm:$0xff]
    %v61 = vld [vmem:[#allocation5 + $0x70] sm:$0xff]
    %v62 = vld [vmem:[#allocation5 + $0x78] sm:$0xff]
    %v63 = vld [vmem:[%s2] sm:$0x1]
    %v64 = vlaneseq
    %v65 = vshrl.u32 %v64, 7
    %v66 = vsub.s32 0, %v65
    %v67 = vrot.slane %v63, %v66
    %68 = vmatprep.subr.mxu0 0.0
    %69 = vmatpush1.msra.mxu0 %v47
    %70 = vmatprep.subr.mxu0 0.0
    %71 = vmatpush1.msra.mxu0 %v48
    %72 = vmatprep.subr.mxu0 0.0
    %73 = vmatpush1.msra.mxu0 %v49
    %74 = vmatprep.subr.mxu0 0.0
    %75 = vmatpush1.msra.mxu0 %v50
    %76 = vmatprep.subr.mxu0 0.0
    %77 = vmatpush1.msra.mxu0 %v51
    %78 = vmatprep.subr.mxu0 0.0
    %79 = vmatpush1.msra.mxu0 %v52
    %80 = vmatprep.subr.mxu0 0.0
    %81 = vmatpush1.msra.mxu0 %v53
    %82 = vmatprep.subr.mxu0 0.0
    %83 = vmatpush1.msra.mxu0 %v54
    %84 = vmatprep.subr.mxu0 0.0
    %85 = vmatpush1.msra.mxu0 %v55
    %86 = vmatprep.subr.mxu0 0.0
    %87 = vmatpush1.msra.mxu0 %v56
    %88 = vmatprep.subr.mxu0 0.0
    %89 = vmatpush1.msra.mxu0 %v57
    %90 = vmatprep.subr.mxu0 0.0
    %91 = vmatpush1.msra.mxu0 %v58
    %92 = vmatprep.subr.mxu0 0.0
    %93 = vmatpush1.msra.mxu0 %v59
    %94 = vmatprep.subr.mxu0 0.0
    %95 = vmatpush1.msra.mxu0 %v60
    %96 = vmatprep.subr.mxu0 0.0
    %97 = vmatpush1.msra.mxu0 %v61
    %98 = vmatprep.subr.mxu0 0.0
    %99 = vmatpush1.msra.mxu0 %v62
    %100 = vmatprep.subr.mxu0 0.0
    %101 = vmatpush1.msra.mxu0 0.0
    %102 = vmatprep.subr.mxu0 0.0
    %103 = vmatpush1.msra.mxu0 0.0
    %104 = vmatprep.subr.mxu0 0.0
    %105 = vmatpush1.msra.mxu0 0.0
    %106 = vmatprep.subr.mxu0 0.0
    %107 = vmatpush1.msra.mxu0 0.0
    %108 = vmatprep.subr.mxu0 0.0
    %109 = vmatpush1.msra.mxu0 0.0
    %110 = vmatprep.subr.mxu0 0.0
    %111 = vmatpush1.msra.mxu0 0.0
    %112 = vmatprep.subr.mxu0 0.0
    %113 = vmatpush1.msra.mxu0 0.0
    %114 = vmatprep.subr.mxu0 0.0
    %115 = vmatpush1.msra.mxu0 0.0
    %116 = vmatprep.subr.mxu0 0.0
    %117 = vmatpush1.msra.mxu0 0.0
    %118 = vmatprep.subr.mxu0 0.0
    %119 = vmatpush1.msra.mxu0 0.0
    %120 = vmatprep.subr.mxu0 0.0
    %121 = vmatpush1.msra.mxu0 0.0
    %122 = vmatprep.subr.mxu0 0.0
    %123 = vmatpush1.msra.mxu0 0.0
    %124 = vmatprep.subr.mxu0 0.0
    %125 = vmatpush1.msra.mxu0 0.0
    %126 = vmatprep.subr.mxu0 0.0
    %127 = vmatpush1.msra.mxu0 0.0
    %128 = vmatprep.subr.mxu0 0.0
    %129 = vmatpush1.msra.mxu0 0.0
    %130 = vmatprep.subr.mxu0 0.0
    %131 = vmatpush1.msra.mxu0 0.0
    %132 = vmatprep.mubr.f32.mxu0 0.0
    %133 = vmatmul.mubr.f32.gmra.mrb[0].mxu0 %v43
    %v134 = vpop.f32.mrb[0].mxu0
    %v135 = vadd.f32 %v67, %v134
    %v136 = vpop.f32.mrb[0].mxu0
    %137 = vmatprep.mubr.f32.mxu0 0.0
    %138 = vmatmul.mubr.f32.gmra.mrb[0].mxu0 %v44
    %v139 = vpop.f32.mrb[0].mxu0
    %v140 = vadd.f32 %v67, %v139
    %v141 = vpop.f32.mrb[0].mxu0
    %142 = vmatprep.mubr.f32.mxu0 0.0
    %143 = vmatmul.mubr.f32.gmra.mrb[0].mxu0 %v45
    %v144 = vpop.f32.mrb[0].mxu0
    %v145 = vadd.f32 %v67, %v144
    %v146 = vpop.f32.mrb[0].mxu0
    %147 = vmatprep.mubr.f32.mxu0 0.0
    %148 = vmatmul.mubr.f32.gmra.mrb[0].mxu0 %v46
    %v149 = vpop.f32.mrb[0].mxu0
    %v150 = vadd.f32 %v67, %v149
    %v151 = vpop.f32.mrb[0].mxu0
    %152 = vdwg.mxu0
    %v153 = vmul.f32 %v135, 0.5
    %v154 = vmul.f32 %v140, 0.5
    %v155 = vmul.f32 %v145, 0.5
    %v156 = vmul.f32 %v150, 0.5
    %v157 = vmul.f32 %v135, 0.70710677
    %v158 = vmul.f32 %v140, 0.70710677
    %v159 = vmul.f32 %v145, 0.70710677
    %v160 = vmul.f32 %v150, 0.70710677
    %v161 = verf.f32.pop %v157
    %v162 = verf.f32.pop %v158
    %v163 = verf.f32.pop %v159
    %v164 = verf.f32.pop %v160
    %v165 = vadd.f32 %v161, 1.0
    %v166 = vadd.f32 %v162, 1.0
    %v167 = vadd.f32 %v163, 1.0
    %v168 = vadd.f32 %v164, 1.0
    %v169 = vmul.f32 %v153, %v165
    %v170 = vmul.f32 %v154, %v166
    %v171 = vmul.f32 %v155, %v167
    %v172 = vmul.f32 %v156, %v168
    %v173 = vld [vmem:[%s2 + $0x1] sm:$0x1]
    %v174 = vlaneseq
    %v175 = vshrl.u32 %v174, 7
    %v176 = vsub.s32 0, %v175
    %v177 = vrot.slane %v173, %v176
    %v178 = vmul.f32 %v169, %v177
    %v179 = vmul.f32 %v170, %v177
    %v180 = vmul.f32 %v171, %v177
    %v181 = vmul.f32 %v172, %v177
    %v182 = vld [vmem:[%s2 + $0x2] sm:$0x1]
    %v183 = vlaneseq
    %v184 = vshrl.u32 %v183, 7
    %v185 = vsub.s32 0, %v184
    %v186 = vrot.slane %v182, %v185
    %v187 = vadd.f32 %v178, %v186
    %v188 = vadd.f32 %v179, %v186
    %v189 = vadd.f32 %v180, %v186
    %v190 = vadd.f32 %v181, %v186
    %191 = vst [vmem:[#allocation7] sm:$0xff] %v187
    %192 = vst [vmem:[#allocation7 + $0x8] sm:$0xff] %v188
    %193 = vst [vmem:[#allocation7 + $0x10] sm:$0xff] %v189
    %194 = vst [vmem:[#allocation7 + $0x18] sm:$0xff] %v190
    // Predicated region
    $region22: #{tpu_custom_call.1} parent=1 // pred_check
      _
    $region23: #{tpu_custom_call.1} parent=1 // pred_check_branch
      %196 = sbr.rel (0) target = $region25
    $region24: #{tpu_custom_call.1} parent=1 // pred_region
      %s198 = ssub.s32 512, 512
      %199 = vsyncadd [#allocation4], %s198
      %s200 = sshll.u32 [#allocation7], 4
      %s201 = int_to_ptr.vmem [resolvable:$true] %s200
      %206 = dma.vmem_to_hbm [thread:$0]  %s201, 512, %s3, [#allocation4], 128, 128, 8
    $region25: #{tpu_custom_call.1} parent=1 // pred_fallthru
      _
    // Predicated region
    $region26: #{tpu_custom_call.1} parent=1 // pred_check
      _
    $region27: #{tpu_custom_call.1} parent=1 // pred_check_branch
      %208 = sbr.rel (0) target = $region29
    $region28: #{tpu_custom_call.1} parent=1 // pred_region
      %209 = dma.done [#allocation4], 512
    $region29: #{tpu_custom_call.1} parent=1 // pred_fallthru
      _
    %210 = vsyncpa [#allocation3], 1
    %211 = vsyncpa [#allocation6], 1
    %212 = vsyncpa [#allocation4], 1

</llo_original>
